<compile_context>
chip_gen: v7x
topology: tpu7x:2x2x1
jax: 0.10.0
libtpu: 0.0.40
codegen_flags: <defaults>
</compile_context>

<pallas_src>
import jax
import jax.numpy as jnp
from jax.experimental import pallas as pl
from jax.experimental.pallas import tpu as pltpu


_TILE = 512  # 512x512 f32 tile = 1 MiB; double-buffered inputs+outputs stay
             # well under the 32 MiB default scoped VMEM on every generation.


def _tile_and_pad(dim, target=_TILE):
    """Return (tile_size, padded_extent) for one dimension."""
    if dim <= target:
        return dim, dim                       # full-extent block is always legal
    padded = -(-dim // target) * target       # round up to a multiple of target
    return target, padded


def _pad_axis(arr, axis, new_size):
    size = arr.shape[axis]
    if new_size == size:
        return arr
    widths = [(0, 0)] * arr.ndim
    widths[axis] = (0, new_size - size)
    return jnp.pad(arr, widths)               # zero padding


# ---------------- Pallas kernels ----------------

def _mv_kernel(x_ref, w_ref, o_ref, acc_ref):
    # x_ref: (1, TK), w_ref: (TN, TK)  ->  o_ref / acc_ref: (1, TN) (lane-dense)
    @pl.when(pl.program_id(1) == 0)
    def _():
        acc_ref[...] = jnp.zeros_like(acc_ref)

    acc_ref[...] += jax.lax.dot_general(
        x_ref[...], w_ref[...],
        dimension_numbers=(((1,), (1,)), ((), ())),   # contract over M
        preferred_element_type=jnp.float32)

    @pl.when(pl.program_id(1) == pl.num_programs(1) - 1)
    def _():
        o_ref[...] = acc_ref[...].astype(o_ref.dtype)


def _add_kernel(w_ref, x_ref, o_ref):
    # w_ref: (TN, TM), x_ref: (1, TM) broadcast over rows
    o_ref[...] = (w_ref[...] + x_ref[...]).astype(o_ref.dtype)


# ---------------- wrappers ----------------

def _pallas_mv(weight, x2d):
    N, M = weight.shape
    tn, n_pad = _tile_and_pad(N)
    tk, m_pad = _tile_and_pad(M)
    w = _pad_axis(_pad_axis(weight, 0, n_pad), 1, m_pad)
    x = _pad_axis(x2d, 1, m_pad)              # zero pad: no effect on the dot
    grid = (n_pad // tn, m_pad // tk)

    out = pl.pallas_call(
        _mv_kernel,
        out_shape=jax.ShapeDtypeStruct((1, n_pad), weight.dtype),
        grid_spec=pltpu.PrefetchScalarGridSpec(
            num_scalar_prefetch=0,
            grid=grid,
            in_specs=[
                pl.BlockSpec((1, tk), lambda j, k: (0, k)),
                pl.BlockSpec((tn, tk), lambda j, k: (j, k)),
            ],
            out_specs=pl.BlockSpec((1, tn), lambda j, k: (0, j)),
            scratch_shapes=[pltpu.VMEM((1, tn), jnp.float32)],
        ),
        compiler_params=pltpu.CompilerParams(
            dimension_semantics=("parallel", "arbitrary")),
    )(x, w)
    return out[0, :N]                          # (N,)


def _pallas_add(weight, x2d):
    N, M = weight.shape
    tn, n_pad = _tile_and_pad(N)
    tm, m_pad = _tile_and_pad(M)
    w = _pad_axis(_pad_axis(weight, 0, n_pad), 1, m_pad)
    x = _pad_axis(x2d, 1, m_pad)
    grid = (n_pad // tn, m_pad // tm)

    out = pl.pallas_call(
        _add_kernel,
        out_shape=jax.ShapeDtypeStruct((n_pad, m_pad), weight.dtype),
        grid_spec=pltpu.PrefetchScalarGridSpec(
            num_scalar_prefetch=0,
            grid=grid,
            in_specs=[
                pl.BlockSpec((tn, tm), lambda i, j: (i, j)),
                pl.BlockSpec((1, tm), lambda i, j: (0, j)),
            ],
            out_specs=pl.BlockSpec((tn, tm), lambda i, j: (i, j)),
        ),
        compiler_params=pltpu.CompilerParams(
            dimension_semantics=("parallel", "parallel")),
    )(w, x)
    return out[:N, :M]                         # (N, M)


def my_module_forward(weight, x):
    """Pallas implementation of MyModule.forward."""
    N, M = weight.shape
    assert x.shape == (M,)
    x = x.astype(weight.dtype)                 # compute in weight dtype (PyTorch)

    # Data-dependent, shape-polymorphic branch: the O(M) reduction runs as a
    # plain XLA op (no extra Pallas launch); the unavoidable D2H sync picks
    # which Pallas kernel to launch, exactly like PyTorch eager.
    s = float(jnp.sum(x))
    x2d = x.reshape(1, M)                      # lane-dense row, built once

    if s > 0:
        return _pallas_mv(weight, x2d)         # (N,)
    else:
        return _pallas_add(weight, x2d)        # (N, M)


# ---------------- demo / test ----------------

if __name__ == "__main__":
    N, M = 512, 1024                           # exercises a real (1,2)/(1,2) grid

    key = jax.random.PRNGKey(0)
    kw, kx = jax.random.split(key)

    # "torch.rand(N, M)" equivalent: uniform [0, 1)
    weight = jax.random.uniform(kw, (N, M), dtype=jnp.float32)

    # branch 1: positive-sum input -> weight.mv(input)
    x_pos = jax.random.uniform(kx, (M,), dtype=jnp.float32)   # sum > 0
    out_mv = jax.block_until_ready(my_module_forward(weight, x_pos))
    ref_mv = weight @ x_pos
    assert out_mv.shape == (N,)
    assert jnp.allclose(out_mv, ref_mv, rtol=1e-5, atol=1e-4)

    # branch 2: non-positive-sum input -> weight + input (broadcast)
    x_neg = -x_pos
    out_add = jax.block_until_ready(my_module_forward(weight, x_neg))
    ref_add = weight + x_neg[None, :]
    assert out_add.shape == (N, M)
    assert jnp.allclose(out_add, ref_add, rtol=1e-5, atol=1e-5)

    print("KERNEL_OK")
</pallas_src>

<mosaic_0001>
module attributes {stable_mosaic.version = 11 : i64} {
  func.func @_mv_kernel(%arg0: i32, %arg1: i32, %arg2: memref<1x512xf32, #tpu.memory_space<vmem>>, %arg3: memref<512x512xf32, #tpu.memory_space<vmem>>, %arg4: memref<1x512xf32, #tpu.memory_space<vmem>>, %arg5: memref<1x512xf32, #tpu.memory_space<vmem>>) attributes {dimension_semantics = [#tpu.dimension_semantics<parallel>, #tpu.dimension_semantics<arbitrary>], iteration_bounds = array<i64: 1, 2>, scalar_prefetch = 0 : i64, scratch_operands = 1 : i64, tpu.core_type = #tpu.core_type<tc>, window_params = [{transform_indices = @transform_0, window_bounds = array<i64: 1, 512>}, {transform_indices = @transform_1, window_bounds = array<i64: 512, 512>}, {transform_indices = @transform_2, window_bounds = array<i64: 1, 512>}]} {
    %c0_i32 = arith.constant 0 : i32
    %0 = arith.cmpi eq, %arg1, %c0_i32 : i32
    %1 = arith.extui %0 : i1 to i32
    %c0_i32_0 = arith.constant 0 : i32
    %2 = arith.cmpi ne, %1, %c0_i32_0 : i32
    scf.if %2 {
      %cst_9 = arith.constant 0.000000e+00 : f32
      %12 = vector.broadcast %cst_9 : f32 to vector<1x512xf32>
      %c0_10 = arith.constant 0 : index
      %c0_11 = arith.constant 0 : index
      %13 = vector.load %arg5[%c0_10, %c0_11] : memref<1x512xf32, #tpu.memory_space<vmem>>, vector<1x512xf32>
      tpu.vector_store %arg5[%c0_10, %c0_11], %12 {strides = array<i32>} : memref<1x512xf32, #tpu.memory_space<vmem>>, vector<1x512xf32>,
    } else {
    }
    %c0 = arith.constant 0 : index
    %c0_1 = arith.constant 0 : index
    %3 = vector.load %arg5[%c0, %c0_1] : memref<1x512xf32, #tpu.memory_space<vmem>>, vector<1x512xf32>
    %c0_2 = arith.constant 0 : index
    %c0_3 = arith.constant 0 : index
    %4 = vector.load %arg2[%c0_2, %c0_3] : memref<1x512xf32, #tpu.memory_space<vmem>>, vector<1x512xf32>
    %c0_4 = arith.constant 0 : index
    %c0_5 = arith.constant 0 : index
    %5 = vector.load %arg3[%c0_4, %c0_5] : memref<512x512xf32, #tpu.memory_space<vmem>>, vector<512x512xf32>
    %cst = arith.constant dense<0.000000e+00> : vector<1x512xf32>
    %6 = tpu.matmul %4, %5, %cst {dimension_numbers = #tpu.dot_dimension_numbers<[1], [1], [0], [0], [0, 0, 1, 0], [], []>} : vector<1x512xf32>, vector<512x512xf32>, vector<1x512xf32> -> vector<1x512xf32>
    %7 = arith.addf %3, %6 : vector<1x512xf32>
    %c0_6 = arith.constant 0 : index
    %c0_7 = arith.constant 0 : index
    %8 = vector.load %arg5[%c0_6, %c0_7] : memref<1x512xf32, #tpu.memory_space<vmem>>, vector<1x512xf32>
    tpu.vector_store %arg5[%c0_6, %c0_7], %7 {strides = array<i32>} : memref<1x512xf32, #tpu.memory_space<vmem>>, vector<1x512xf32>,
    %c1_i32 = arith.constant 1 : i32
    %9 = arith.cmpi eq, %arg1, %c1_i32 : i32
    %10 = arith.extui %9 : i1 to i32
    %c0_i32_8 = arith.constant 0 : i32
    %11 = arith.cmpi ne, %10, %c0_i32_8 : i32
    scf.if %11 {
      %c0_9 = arith.constant 0 : index
      %c0_10 = arith.constant 0 : index
      %12 = vector.load %arg5[%c0_9, %c0_10] : memref<1x512xf32, #tpu.memory_space<vmem>>, vector<1x512xf32>
      %c0_11 = arith.constant 0 : index
      %c0_12 = arith.constant 0 : index
      %13 = vector.load %arg4[%c0_11, %c0_12] : memref<1x512xf32, #tpu.memory_space<vmem>>, vector<1x512xf32>
      tpu.vector_store %arg4[%c0_11, %c0_12], %12 {strides = array<i32>} : memref<1x512xf32, #tpu.memory_space<vmem>>, vector<1x512xf32>,
    } else {
    }
    return
  }
  func.func @transform_0(%arg0: i32, %arg1: i32) -> (i32, i32) {
    %c0_i32 = arith.constant 0 : i32
    %c0_i32_0 = arith.constant 0 : i32
    return %c0_i32, %arg1 : i32, i32
  }
  func.func @transform_1(%arg0: i32, %arg1: i32) -> (i32, i32) {
    %c0_i32 = arith.constant 0 : i32
    return %arg0, %arg1 : i32, i32
  }
  func.func @transform_2(%arg0: i32, %arg1: i32) -> (i32, i32) {
    %c0_i32 = arith.constant 0 : i32
    %c0_i32_0 = arith.constant 0 : i32
    return %c0_i32, %arg0 : i32, i32
  }
}

</mosaic_0001>

<llo_original>
// kernel: tpu_custom_call.1
$region0: #{tpu_custom_call.1}
  #allocation0 [shape = 'u32[]', space=smem, size = 0x4, offset = 0x4, fixed_abs, tag = 'smem constant byte address 0x4 - core index']
  #allocation1 [shape = 'u32[144,128]{1,0:T(1,128)}', space=vmem, size = 0x12000, scoped, tag = 'internal scratch']
  #allocation2 [shape = 'f32[1,512]{1,0:T(1,128)}', space=vmem, size = 0x800, scoped, tag = 'scratch operand']
  %s0 = inlined_call_operand.hbm [shape: f32[1,1024], index: 0, kind: input, shape index: {}]
  %s1 = inlined_call_operand.hbm [shape: f32[512,1024], index: 1, kind: input, shape index: {}]
  %s2 = inlined_call_operand.hbm [shape: f32[1,512], index: 2, kind: output, shape index: {}]
  %s3 = sld [smem:[#allocation0]]
  $region57: #{tpu_custom_call.1} parent=0
    _
  %s5 = ssub.s32 1, %s3
  %s6 = scalar_select 0, %s5, %s3
  $region1: #{tpu_custom_call.1} parent=0
    #allocation3 [shape = 'u8[4096]{0}', space=vmem, size = 0x1000, scoped, tag = 'input window, operand 0']
    #allocation4 [shape = 's32[2]{0}', space=sflag, size = 0x8, scoped, tag = 'scoped memory for tpu_custom_call.1']
    #allocation5 [shape = 's32[2]{0}', space=sflag, size = 0x8, scoped, tag = 'scoped memory for tpu_custom_call.1']
    #allocation6 [shape = 'u8[2097152]{0}', space=vmem, size = 0x200000, scoped, tag = 'input window, operand 1']
    #allocation7 [shape = 's32[2]{0}', space=sflag, size = 0x8, scoped, tag = 'scoped memory for tpu_custom_call.1']
    #allocation8 [shape = 'u8[2048]{0}', space=vmem, size = 0x800, scoped, tag = 'output window, operand 0, single buffered']
    %7 = vsyncpa [#allocation4], 0
    %s8 = scalar_lea.sflag [#allocation4], 1
    %9 = vsyncpa %s8, 0
    %10 = vsyncpa [#allocation7], 0
    %s11 = scalar_lea.sflag [#allocation7], 1
    %12 = vsyncpa %s11, 0
    %13 = vsyncpa [#allocation5], 0
    loop: start=0, step=1, limit=4
    $region2: #{tpu_custom_call.1} parent=1 // loop_pre_header
      _
    $region3: #{tpu_custom_call.1} parent=1 // loop_header
      %s15 = sphi 0, %s19
      %p16 = scmp.ge.s32.totalorder %s15, 4
      %s22 = sphi 0, %s34
      %s23 = sphi 0, %s30
      %s24 = sphi 0, %s22
      %s25 = sphi 0, %s23
      %s26 = sphi 0, %s24
      %s27 = sphi 0, %s25
      %s37 = sphi 0, %s39
      %s40 = sphi 0, %s37
      %s41 = sphi 0, %s40
      %s57 = sphi 0, %s41
      %s65 = sphi 0, %s67
      %s68 = sphi 0, %s65
      %s69 = sphi 0, %s68
      %s85 = sphi 0, %s69
      %s91 = sphi 0, %s93
      %s94 = sphi 0, %s91
      %s95 = sphi 0, %s94
      %s111 = sphi 0, %s95
    $region4: #{tpu_custom_call.1} parent=1 // loop_header_branch
      %18 = sbr.rel (%p16) target = $region8
    $region5: #{tpu_custom_call.1} parent=1 // loop_body
      %s20 = ssub.s32 %s15, 1
      %s21 = ssub.s32 %s15, 2
      %s28 = sadd.s32 1, %s23
      %p29 = scmp.ge.s32.totalorder %s28, 2
      %s30 = scalar_select %p29, 0, %s28
      %s31 = sadd.s32 1, %s22
      %s32 = scalar_select %p29, %s31, %s22
      %p33 = scmp.ge.s32.totalorder %s32, 1
      %s34 = scalar_select %p33, 0, %s32
      %s35 = ssub.s32 %s23, %s30
      %p36 = scmp.eq.s32.totalorder %s35, 0
      %s38 = sadd.s32 %s37, 1
      %s39 = scalar_select %p36, %s37, %s38
      %p42 = pneg %p36
      %p43 = scmp.eq.s32.totalorder %s15, 1
      %p44 = por %p42, %p43
      %p45 = scmp.ne.s32.totalorder %s37, %s40
      %p46 = scmp.eq.s32.totalorder %s15, 0
      %p47 = por %p45, %p46
      %p48 = scmp.ne.s32.totalorder %s37, %s40
      %p49 = scmp.eq.s32.totalorder %s20, 1
      %p50 = por %p48, %p49
      %p51 = scmp.ne.s32.totalorder %s40, %s41
      %p52 = scmp.eq.s32.totalorder %s20, 0
      %p53 = por %p51, %p52
      %p54 = scmp.ne.s32.totalorder %s40, %s41
      %p55 = scmp.eq.s32.totalorder %s21, 1
      %p56 = por %p54, %p55
      %p58 = scmp.ne.s32.totalorder %s41, %s57
      %p59 = scmp.eq.s32.totalorder %s21, 0
      %p60 = por %p58, %p59
      %s61 = ssub.s32 %s22, %s34
      %s62 = ssub.s32 %s23, %s30
      %s63 = sor.u32 %s61, %s62
      %p64 = scmp.eq.s32.totalorder %s63, 0
      %s66 = sadd.s32 %s65, 1
      %s67 = scalar_select %p64, %s65, %s66
      %p70 = pneg %p64
      %p71 = scmp.eq.s32.totalorder %s15, 1
      %p72 = por %p70, %p71
      %p73 = scmp.ne.s32.totalorder %s65, %s68
      %p74 = scmp.eq.s32.totalorder %s15, 0
      %p75 = por %p73, %p74
      %p76 = scmp.ne.s32.totalorder %s65, %s68
      %p77 = scmp.eq.s32.totalorder %s20, 1
      %p78 = por %p76, %p77
      %p79 = scmp.ne.s32.totalorder %s68, %s69
      %p80 = scmp.eq.s32.totalorder %s20, 0
      %p81 = por %p79, %p80
      %p82 = scmp.ne.s32.totalorder %s68, %s69
      %p83 = scmp.eq.s32.totalorder %s21, 1
      %p84 = por %p82, %p83
      %p86 = scmp.ne.s32.totalorder %s69, %s85
      %p87 = scmp.eq.s32.totalorder %s21, 0
      %p88 = por %p86, %p87
      %s89 = ssub.s32 %s22, %s34
      %p90 = scmp.eq.s32.totalorder %s89, 0
      %s92 = sadd.s32 %s91, 1
      %s93 = scalar_select %p90, %s91, %s92
      %p96 = pneg %p90
      %p97 = scmp.eq.s32.totalorder %s15, 1
      %p98 = por %p96, %p97
      %p99 = scmp.ne.s32.totalorder %s91, %s94
      %p100 = scmp.eq.s32.totalorder %s15, 0
      %p101 = por %p99, %p100
      %p102 = scmp.ne.s32.totalorder %s91, %s94
      %p103 = scmp.eq.s32.totalorder %s20, 1
      %p104 = por %p102, %p103
      %p105 = scmp.ne.s32.totalorder %s94, %s95
      %p106 = scmp.eq.s32.totalorder %s20, 0
      %p107 = por %p105, %p106
      %p108 = scmp.ne.s32.totalorder %s94, %s95
      %p109 = scmp.eq.s32.totalorder %s21, 1
      %p110 = por %p108, %p109
      %p112 = scmp.ne.s32.totalorder %s95, %s111
      %p113 = scmp.eq.s32.totalorder %s21, 0
      %p114 = por %p112, %p113
      %p115 = scmp.le.s32.totalorder 1, %s15
      %p116 = scmp.lt.s32.totalorder %s15, 3
      %p117 = pnand %p115, %p116
      %p118 = pneg %p117
      // Predicated region
      $region9: #{tpu_custom_call.1} parent=5 // pred_check
        _
      $region10: #{tpu_custom_call.1} parent=5 // pred_check_branch
        %120 = sbr.rel (%p117) target = $region12
      $region11: #{tpu_custom_call.1} parent=5 // pred_region
        %s121 = ssub.s32 %s15, 1
      $region12: #{tpu_custom_call.1} parent=5 // pred_fallthru
        _
      %p122 = scmp.lt.s32.totalorder %s15, 2
      // Predicated region
      $region13: #{tpu_custom_call.1} parent=5 // pred_check
        %p123 = pneg %p122
      $region14: #{tpu_custom_call.1} parent=5 // pred_check_branch
        %125 = sbr.rel (%p123) target = $region16
      $region15: #{tpu_custom_call.1} parent=5 // pred_region
        // Predicated region
        $region17: #{tpu_custom_call.1} parent=15 // pred_check
          %p126 = pneg %p47
        $region18: #{tpu_custom_call.1} parent=15 // pred_check_branch
          %128 = sbr.rel (%p126) target = $region20
        $region19: #{tpu_custom_call.1} parent=15 // pred_region
          %s129 = sand.u32 %s37, 1
          %s130 = scalar_lea.sflag [#allocation4], %s129
          %s131 = sand.u32 %s37, 1
          %s132 = smul.addr %s131, 4
          %s133 = scalar_lea.vmem [#allocation3], %s132
          %s134 = smul.u32 4, %s23
          %s136 = ssub.s32 64, 64
          %137 = vsyncadd %s130, %s136
          %s138 = smul.addr %s134, 16
          %s139 = scalar_lea.hbm %s0, %s138
          %s141 = sshll.u32 %s133, 4
          %s142 = int_to_ptr.vmem [resolvable:$true] %s141
          %144 = dma.hbm_to_vmem [thread:$0]  %s139, 64, %s142, %s130
        $region20: #{tpu_custom_call.1} parent=15 // pred_fallthru
          _
        // Predicated region
        $region21: #{tpu_custom_call.1} parent=15 // pred_check
          %p145 = pneg %p75
        $region22: #{tpu_custom_call.1} parent=15 // pred_check_branch
          %147 = sbr.rel (%p145) target = $region24
        $region23: #{tpu_custom_call.1} parent=15 // pred_region
          %s148 = sand.u32 %s65, 1
          %s149 = scalar_lea.sflag [#allocation7], %s148
          %s150 = sand.u32 %s65, 1
          %s151 = smul.addr %s150, 2048
          %s152 = scalar_lea.vmem [#allocation6], %s151
          %s153 = smul.u32 64, %s22
          %s154 = smul.u32 4, %s23
          %s156 = ssub.s32 32768, 32768
          %157 = vsyncadd %s149, %s156
          %s158 = smul.addr %s153, 8
          %s159 = sadd.s32 %s154, %s158
          %s160 = smul.addr %s159, 128
          %s161 = scalar_lea.hbm %s1, %s160
          %s162 = sshll.u32 %s152, 4
          %s163 = int_to_ptr.vmem [resolvable:$true] %s162
          %168 = dma.hbm_to_vmem [thread:$0]  %s161, 32768, %s163, %s149, 1024, 512, 32
        $region24: #{tpu_custom_call.1} parent=15 // pred_fallthru
          _
      $region16: #{tpu_custom_call.1} parent=5 // pred_fallthru
        _
      %p169 = scmp.le.s32.totalorder 1, %s15
      %p170 = scmp.lt.s32.totalorder %s15, 3
      %p171 = pnand %p169, %p170
      %p172 = pneg %p171
      // Predicated region
      $region25: #{tpu_custom_call.1} parent=5 // pred_check
        _
      $region26: #{tpu_custom_call.1} parent=5 // pred_check_branch
        %174 = sbr.rel (%p171) target = $region28
      $region27: #{tpu_custom_call.1} parent=5 // pred_region
        %s175 = ssub.s32 %s15, 1
        %s176 = sand.u32 %s40, 1
        %s177 = scalar_lea.sflag [#allocation4], %s176
        %s178 = sand.u32 %s40, 1
        %s179 = smul.addr %s178, 4
        %s180 = scalar_lea.vmem [#allocation3], %s179
        // Predicated region
        $region29: #{tpu_custom_call.1} parent=27 // pred_check
          %p181 = pneg %p53
        $region30: #{tpu_custom_call.1} parent=27 // pred_check_branch
          %183 = sbr.rel (%p181) target = $region32
        $region31: #{tpu_custom_call.1} parent=27 // pred_region
          %184 = dma.done %s177, 64
        $region32: #{tpu_custom_call.1} parent=27 // pred_fallthru
          _
        %s185 = sand.u32 %s68, 1
        %s186 = scalar_lea.sflag [#allocation7], %s185
        %s187 = sand.u32 %s68, 1
        %s188 = smul.addr %s187, 2048
        %s189 = scalar_lea.vmem [#allocation6], %s188
        // Predicated region
        $region33: #{tpu_custom_call.1} parent=27 // pred_check
          %p190 = pneg %p81
        $region34: #{tpu_custom_call.1} parent=27 // pred_check_branch
          %192 = sbr.rel (%p190) target = $region36
        $region35: #{tpu_custom_call.1} parent=27 // pred_region
          %193 = dma.done %s186, 32768
        $region36: #{tpu_custom_call.1} parent=27 // pred_fallthru
          _
        %s194 = sand.u32 %s40, 1
        %s195 = scalar_lea.sflag [#allocation4], %s194
        %s196 = sand.u32 %s40, 1
        %s197 = smul.addr %s196, 4
        %s198 = scalar_lea.vmem [#allocation3], %s197
        %p199 = pneg %p53
        %p200 = pneg %p50
        %s201 = sand.u32 %s68, 1
        %s202 = scalar_lea.sflag [#allocation7], %s201
        %s203 = sand.u32 %s68, 1
        %s204 = smul.addr %s203, 2048
        %s205 = scalar_lea.vmem [#allocation6], %s204
        %p206 = pneg %p81
        %p207 = pneg %p78
        %p208 = pneg %p107
        %p209 = pneg %p104
        %s210 = smul.u32 4, %s25
        %s211 = smul.u32 64, %s24
        %s212 = smul.u32 4, %s25
        %s213 = smul.u32 4, %s24
        %p214 = scmp.eq.s32.totalorder %s25, 0
        // Predicated region
        $region37: #{tpu_custom_call.1} parent=27 // pred_check
          %p215 = pneg %p214
        $region38: #{tpu_custom_call.1} parent=27 // pred_check_branch
          %217 = sbr.rel (%p215) target = $region40
        $region39: #{tpu_custom_call.1} parent=27 // pred_region
          %v218 = vlaneseq
          %vm219 = vcmp.ge.s32.totalorder %v218, 0
          %vm220 = vcmp.lt.s32.totalorder %v218, 512
          %vm221 = vmand %vm219, %vm220
          %222 = vst.msk [vmem:[#allocation2] sm:$0xf] %vm221, 0.0
        $region40: #{tpu_custom_call.1} parent=27 // pred_fallthru
          _
        %v223 = vld [vmem:[#allocation2] sm:$0xf]
        %v224 = vld [vmem:[%s180] sm:$0xf]
        %v225 = vld [vmem:[%s189] sm:$0xff]
        %v226 = vld [vmem:[%s189 + $0x8] sm:$0xff]
        %v227 = vld [vmem:[%s189 + $0x10] sm:$0xff]
        %v228 = vld [vmem:[%s189 + $0x18] sm:$0xff]
        %v229 = vld [vmem:[%s189 + $0x20] sm:$0xff]
        %v230 = vld [vmem:[%s189 + $0x28] sm:$0xff]
        %v231 = vld [vmem:[%s189 + $0x30] sm:$0xff]
        %v232 = vld [vmem:[%s189 + $0x38] sm:$0xff]
        %v233 = vld [vmem:[%s189 + $0x40] sm:$0xff]
        %v234 = vld [vmem:[%s189 + $0x48] sm:$0xff]
        %v235 = vld [vmem:[%s189 + $0x50] sm:$0xff]
        %v236 = vld [vmem:[%s189 + $0x58] sm:$0xff]
        %v237 = vld [vmem:[%s189 + $0x60] sm:$0xff]
        %v238 = vld [vmem:[%s189 + $0x68] sm:$0xff]
        %v239 = vld [vmem:[%s189 + $0x70] sm:$0xff]
        %v240 = vld [vmem:[%s189 + $0x78] sm:$0xff]
        %v241 = vld [vmem:[%s189 + $0x80] sm:$0xff]
        %v242 = vld [vmem:[%s189 + $0x88] sm:$0xff]
        %v243 = vld [vmem:[%s189 + $0x90] sm:$0xff]
        %v244 = vld [vmem:[%s189 + $0x98] sm:$0xff]
        %v245 = vld [vmem:[%s189 + $0xa0] sm:$0xff]
        %v246 = vld [vmem:[%s189 + $0xa8] sm:$0xff]
        %v247 = vld [vmem:[%s189 + $0xb0] sm:$0xff]
        %v248 = vld [vmem:[%s189 + $0xb8] sm:$0xff]
        %v249 = vld [vmem:[%s189 + $0xc0] sm:$0xff]
        %v250 = vld [vmem:[%s189 + $0xc8] sm:$0xff]
        %v251 = vld [vmem:[%s189 + $0xd0] sm:$0xff]
        %v252 = vld [vmem:[%s189 + $0xd8] sm:$0xff]
        %v253 = vld [vmem:[%s189 + $0xe0] sm:$0xff]
        %v254 = vld [vmem:[%s189 + $0xe8] sm:$0xff]
        %v255 = vld [vmem:[%s189 + $0xf0] sm:$0xff]
        %v256 = vld [vmem:[%s189 + $0xf8] sm:$0xff]
        %v257 = vld [vmem:[%s189 + $0x100] sm:$0xff]
        %v258 = vld [vmem:[%s189 + $0x108] sm:$0xff]
        %v259 = vld [vmem:[%s189 + $0x110] sm:$0xff]
        %v260 = vld [vmem:[%s189 + $0x118] sm:$0xff]
        %v261 = vld [vmem:[%s189 + $0x120] sm:$0xff]
        %v262 = vld [vmem:[%s189 + $0x128] sm:$0xff]
        %v263 = vld [vmem:[%s189 + $0x130] sm:$0xff]
        %v264 = vld [vmem:[%s189 + $0x138] sm:$0xff]
        %v265 = vld [vmem:[%s189 + $0x140] sm:$0xff]
        %v266 = vld [vmem:[%s189 + $0x148] sm:$0xff]
        %v267 = vld [vmem:[%s189 + $0x150] sm:$0xff]
        %v268 = vld [vmem:[%s189 + $0x158] sm:$0xff]
        %v269 = vld [vmem:[%s189 + $0x160] sm:$0xff]
        %v270 = vld [vmem:[%s189 + $0x168] sm:$0xff]
        %v271 = vld [vmem:[%s189 + $0x170] sm:$0xff]
        %v272 = vld [vmem:[%s189 + $0x178] sm:$0xff]
        %v273 = vld [vmem:[%s189 + $0x180] sm:$0xff]
        %v274 = vld [vmem:[%s189 + $0x188] sm:$0xff]
        %v275 = vld [vmem:[%s189 + $0x190] sm:$0xff]
        %v276 = vld [vmem:[%s189 + $0x198] sm:$0xff]
        %v277 = vld [vmem:[%s189 + $0x1a0] sm:$0xff]
        %v278 = vld [vmem:[%s189 + $0x1a8] sm:$0xff]
        %v279 = vld [vmem:[%s189 + $0x1b0] sm:$0xff]
        %v280 = vld [vmem:[%s189 + $0x1b8] sm:$0xff]
        %v281 = vld [vmem:[%s189 + $0x1c0] sm:$0xff]
        %v282 = vld [vmem:[%s189 + $0x1c8] sm:$0xff]
        %v283 = vld [vmem:[%s189 + $0x1d0] sm:$0xff]
        %v284 = vld [vmem:[%s189 + $0x1d8] sm:$0xff]
        %v285 = vld [vmem:[%s189 + $0x1e0] sm:$0xff]
        %v286 = vld [vmem:[%s189 + $0x1e8] sm:$0xff]
        %v287 = vld [vmem:[%s189 + $0x1f0] sm:$0xff]
        %v288 = vld [vmem:[%s189 + $0x1f8] sm:$0xff]
        %v289 = vld [vmem:[%s189 + $0x200] sm:$0xff]
        %v290 = vld [vmem:[%s189 + $0x208] sm:$0xff]
        %v291 = vld [vmem:[%s189 + $0x210] sm:$0xff]
        %v292 = vld [vmem:[%s189 + $0x218] sm:$0xff]
        %v293 = vld [vmem:[%s189 + $0x220] sm:$0xff]
        %v294 = vld [vmem:[%s189 + $0x228] sm:$0xff]
        %v295 = vld [vmem:[%s189 + $0x230] sm:$0xff]
        %v296 = vld [vmem:[%s189 + $0x238] sm:$0xff]
        %v297 = vld [vmem:[%s189 + $0x240] sm:$0xff]
        %v298 = vld [vmem:[%s189 + $0x248] sm:$0xff]
        %v299 = vld [vmem:[%s189 + $0x250] sm:$0xff]
        %v300 = vld [vmem:[%s189 + $0x258] sm:$0xff]
        %v301 = vld [vmem:[%s189 + $0x260] sm:$0xff]
        %v302 = vld [vmem:[%s189 + $0x268] sm:$0xff]
        %v303 = vld [vmem:[%s189 + $0x270] sm:$0xff]
        %v304 = vld [vmem:[%s189 + $0x278] sm:$0xff]
        %v305 = vld [vmem:[%s189 + $0x280] sm:$0xff]
        %v306 = vld [vmem:[%s189 + $0x288] sm:$0xff]
        %v307 = vld [vmem:[%s189 + $0x290] sm:$0xff]
        %v308 = vld [vmem:[%s189 + $0x298] sm:$0xff]
        %v309 = vld [vmem:[%s189 + $0x2a0] sm:$0xff]
        %v310 = vld [vmem:[%s189 + $0x2a8] sm:$0xff]
        %v311 = vld [vmem:[%s189 + $0x2b0] sm:$0xff]
        %v312 = vld [vmem:[%s189 + $0x2b8] sm:$0xff]
        %v313 = vld [vmem:[%s189 + $0x2c0] sm:$0xff]
        %v314 = vld [vmem:[%s189 + $0x2c8] sm:$0xff]
        %v315 = vld [vmem:[%s189 + $0x2d0] sm:$0xff]
        %v316 = vld [vmem:[%s189 + $0x2d8] sm:$0xff]
        %v317 = vld [vmem:[%s189 + $0x2e0] sm:$0xff]
        %v318 = vld [vmem:[%s189 + $0x2e8] sm:$0xff]
        %v319 = vld [vmem:[%s189 + $0x2f0] sm:$0xff]
        %v320 = vld [vmem:[%s189 + $0x2f8] sm:$0xff]
        %v321 = vld [vmem:[%s189 + $0x300] sm:$0xff]
        %v322 = vld [vmem:[%s189 + $0x308] sm:$0xff]
        %v323 = vld [vmem:[%s189 + $0x310] sm:$0xff]
        %v324 = vld [vmem:[%s189 + $0x318] sm:$0xff]
        %v325 = vld [vmem:[%s189 + $0x320] sm:$0xff]
        %v326 = vld [vmem:[%s189 + $0x328] sm:$0xff]
        %v327 = vld [vmem:[%s189 + $0x330] sm:$0xff]
        %v328 = vld [vmem:[%s189 + $0x338] sm:$0xff]
        %v329 = vld [vmem:[%s189 + $0x340] sm:$0xff]
        %v330 = vld [vmem:[%s189 + $0x348] sm:$0xff]
        %v331 = vld [vmem:[%s189 + $0x350] sm:$0xff]
        %v332 = vld [vmem:[%s189 + $0x358] sm:$0xff]
        %v333 = vld [vmem:[%s189 + $0x360] sm:$0xff]
        %v334 = vld [vmem:[%s189 + $0x368] sm:$0xff]
        %v335 = vld [vmem:[%s189 + $0x370] sm:$0xff]
        %v336 = vld [vmem:[%s189 + $0x378] sm:$0xff]
        %v337 = vld [vmem:[%s189 + $0x380] sm:$0xff]
        %v338 = vld [vmem:[%s189 + $0x388] sm:$0xff]
        %v339 = vld [vmem:[%s189 + $0x390] sm:$0xff]
        %v340 = vld [vmem:[%s189 + $0x398] sm:$0xff]
        %v341 = vld [vmem:[%s189 + $0x3a0] sm:$0xff]
        %v342 = vld [vmem:[%s189 + $0x3a8] sm:$0xff]
        %v343 = vld [vmem:[%s189 + $0x3b0] sm:$0xff]
        %v344 = vld [vmem:[%s189 + $0x3b8] sm:$0xff]
        %v345 = vld [vmem:[%s189 + $0x3c0] sm:$0xff]
        %v346 = vld [vmem:[%s189 + $0x3c8] sm:$0xff]
        %v347 = vld [vmem:[%s189 + $0x3d0] sm:$0xff]
        %v348 = vld [vmem:[%s189 + $0x3d8] sm:$0xff]
        %v349 = vld [vmem:[%s189 + $0x3e0] sm:$0xff]
        %v350 = vld [vmem:[%s189 + $0x3e8] sm:$0xff]
        %v351 = vld [vmem:[%s189 + $0x3f0] sm:$0xff]
        %v352 = vld [vmem:[%s189 + $0x3f8] sm:$0xff]
        %v353 = vld [vmem:[%s189 + $0x400] sm:$0xff]
        %v354 = vld [vmem:[%s189 + $0x408] sm:$0xff]
        %v355 = vld [vmem:[%s189 + $0x410] sm:$0xff]
        %v356 = vld [vmem:[%s189 + $0x418] sm:$0xff]
        %v357 = vld [vmem:[%s189 + $0x420] sm:$0xff]
        %v358 = vld [vmem:[%s189 + $0x428] sm:$0xff]
        %v359 = vld [vmem:[%s189 + $0x430] sm:$0xff]
        %v360 = vld [vmem:[%s189 + $0x438] sm:$0xff]
        %v361 = vld [vmem:[%s189 + $0x440] sm:$0xff]
        %v362 = vld [vmem:[%s189 + $0x448] sm:$0xff]
        %v363 = vld [vmem:[%s189 + $0x450] sm:$0xff]
        %v364 = vld [vmem:[%s189 + $0x458] sm:$0xff]
        %v365 = vld [vmem:[%s189 + $0x460] sm:$0xff]
        %v366 = vld [vmem:[%s189 + $0x468] sm:$0xff]
        %v367 = vld [vmem:[%s189 + $0x470] sm:$0xff]
        %v368 = vld [vmem:[%s189 + $0x478] sm:$0xff]
        %v369 = vld [vmem:[%s189 + $0x480] sm:$0xff]
        %v370 = vld [vmem:[%s189 + $0x488] sm:$0xff]
        %v371 = vld [vmem:[%s189 + $0x490] sm:$0xff]
        %v372 = vld [vmem:[%s189 + $0x498] sm:$0xff]
        %v373 = vld [vmem:[%s189 + $0x4a0] sm:$0xff]
        %v374 = vld [vmem:[%s189 + $0x4a8] sm:$0xff]
        %v375 = vld [vmem:[%s189 + $0x4b0] sm:$0xff]
        %v376 = vld [vmem:[%s189 + $0x4b8] sm:$0xff]
        %v377 = vld [vmem:[%s189 + $0x4c0] sm:$0xff]
        %v378 = vld [vmem:[%s189 + $0x4c8] sm:$0xff]
        %v379 = vld [vmem:[%s189 + $0x4d0] sm:$0xff]
        %v380 = vld [vmem:[%s189 + $0x4d8] sm:$0xff]
        %v381 = vld [vmem:[%s189 + $0x4e0] sm:$0xff]
        %v382 = vld [vmem:[%s189 + $0x4e8] sm:$0xff]
        %v383 = vld [vmem:[%s189 + $0x4f0] sm:$0xff]
        %v384 = vld [vmem:[%s189 + $0x4f8] sm:$0xff]
        %v385 = vld [vmem:[%s189 + $0x500] sm:$0xff]
        %v386 = vld [vmem:[%s189 + $0x508] sm:$0xff]
        %v387 = vld [vmem:[%s189 + $0x510] sm:$0xff]
        %v388 = vld [vmem:[%s189 + $0x518] sm:$0xff]
        %v389 = vld [vmem:[%s189 + $0x520] sm:$0xff]
        %v390 = vld [vmem:[%s189 + $0x528] sm:$0xff]
        %v391 = vld [vmem:[%s189 + $0x530] sm:$0xff]
        %v392 = vld [vmem:[%s189 + $0x538] sm:$0xff]
        %v393 = vld [vmem:[%s189 + $0x540] sm:$0xff]
        %v394 = vld [vmem:[%s189 + $0x548] sm:$0xff]
        %v395 = vld [vmem:[%s189 + $0x550] sm:$0xff]
        %v396 = vld [vmem:[%s189 + $0x558] sm:$0xff]
        %v397 = vld [vmem:[%s189 + $0x560] sm:$0xff]
        %v398 = vld [vmem:[%s189 + $0x568] sm:$0xff]
        %v399 = vld [vmem:[%s189 + $0x570] sm:$0xff]
        %v400 = vld [vmem:[%s189 + $0x578] sm:$0xff]
        %v401 = vld [vmem:[%s189 + $0x580] sm:$0xff]
        %v402 = vld [vmem:[%s189 + $0x588] sm:$0xff]
        %v403 = vld [vmem:[%s189 + $0x590] sm:$0xff]
        %v404 = vld [vmem:[%s189 + $0x598] sm:$0xff]
        %v405 = vld [vmem:[%s189 + $0x5a0] sm:$0xff]
        %v406 = vld [vmem:[%s189 + $0x5a8] sm:$0xff]
        %v407 = vld [vmem:[%s189 + $0x5b0] sm:$0xff]
        %v408 = vld [vmem:[%s189 + $0x5b8] sm:$0xff]
        %v409 = vld [vmem:[%s189 + $0x5c0] sm:$0xff]
        %v410 = vld [vmem:[%s189 + $0x5c8] sm:$0xff]
        %v411 = vld [vmem:[%s189 + $0x5d0] sm:$0xff]
        %v412 = vld [vmem:[%s189 + $0x5d8] sm:$0xff]
        %v413 = vld [vmem:[%s189 + $0x5e0] sm:$0xff]
        %v414 = vld [vmem:[%s189 + $0x5e8] sm:$0xff]
        %v415 = vld [vmem:[%s189 + $0x5f0] sm:$0xff]
        %v416 = vld [vmem:[%s189 + $0x5f8] sm:$0xff]
        %v417 = vld [vmem:[%s189 + $0x600] sm:$0xff]
        %v418 = vld [vmem:[%s189 + $0x608] sm:$0xff]
        %v419 = vld [vmem:[%s189 + $0x610] sm:$0xff]
        %v420 = vld [vmem:[%s189 + $0x618] sm:$0xff]
        %v421 = vld [vmem:[%s189 + $0x620] sm:$0xff]
        %v422 = vld [vmem:[%s189 + $0x628] sm:$0xff]
        %v423 = vld [vmem:[%s189 + $0x630] sm:$0xff]
        %v424 = vld [vmem:[%s189 + $0x638] sm:$0xff]
        %v425 = vld [vmem:[%s189 + $0x640] sm:$0xff]
        %v426 = vld [vmem:[%s189 + $0x648] sm:$0xff]
        %v427 = vld [vmem:[%s189 + $0x650] sm:$0xff]
        %v428 = vld [vmem:[%s189 + $0x658] sm:$0xff]
        %v429 = vld [vmem:[%s189 + $0x660] sm:$0xff]
        %v430 = vld [vmem:[%s189 + $0x668] sm:$0xff]
        %v431 = vld [vmem:[%s189 + $0x670] sm:$0xff]
        %v432 = vld [vmem:[%s189 + $0x678] sm:$0xff]
        %v433 = vld [vmem:[%s189 + $0x680] sm:$0xff]
        %v434 = vld [vmem:[%s189 + $0x688] sm:$0xff]
        %v435 = vld [vmem:[%s189 + $0x690] sm:$0xff]
        %v436 = vld [vmem:[%s189 + $0x698] sm:$0xff]
        %v437 = vld [vmem:[%s189 + $0x6a0] sm:$0xff]
        %v438 = vld [vmem:[%s189 + $0x6a8] sm:$0xff]
        %v439 = vld [vmem:[%s189 + $0x6b0] sm:$0xff]
        %v440 = vld [vmem:[%s189 + $0x6b8] sm:$0xff]
        %v441 = vld [vmem:[%s189 + $0x6c0] sm:$0xff]
        %v442 = vld [vmem:[%s189 + $0x6c8] sm:$0xff]
        %v443 = vld [vmem:[%s189 + $0x6d0] sm:$0xff]
        %v444 = vld [vmem:[%s189 + $0x6d8] sm:$0xff]
        %v445 = vld [vmem:[%s189 + $0x6e0] sm:$0xff]
        %v446 = vld [vmem:[%s189 + $0x6e8] sm:$0xff]
        %v447 = vld [vmem:[%s189 + $0x6f0] sm:$0xff]
        %v448 = vld [vmem:[%s189 + $0x6f8] sm:$0xff]
        %v449 = vld [vmem:[%s189 + $0x700] sm:$0xff]
        %v450 = vld [vmem:[%s189 + $0x708] sm:$0xff]
        %v451 = vld [vmem:[%s189 + $0x710] sm:$0xff]
        %v452 = vld [vmem:[%s189 + $0x718] sm:$0xff]
        %v453 = vld [vmem:[%s189 + $0x720] sm:$0xff]
        %v454 = vld [vmem:[%s189 + $0x728] sm:$0xff]
        %v455 = vld [vmem:[%s189 + $0x730] sm:$0xff]
        %v456 = vld [vmem:[%s189 + $0x738] sm:$0xff]
        %v457 = vld [vmem:[%s189 + $0x740] sm:$0xff]
        %v458 = vld [vmem:[%s189 + $0x748] sm:$0xff]
        %v459 = vld [vmem:[%s189 + $0x750] sm:$0xff]
        %v460 = vld [vmem:[%s189 + $0x758] sm:$0xff]
        %v461 = vld [vmem:[%s189 + $0x760] sm:$0xff]
        %v462 = vld [vmem:[%s189 + $0x768] sm:$0xff]
        %v463 = vld [vmem:[%s189 + $0x770] sm:$0xff]
        %v464 = vld [vmem:[%s189 + $0x778] sm:$0xff]
        %v465 = vld [vmem:[%s189 + $0x780] sm:$0xff]
        %v466 = vld [vmem:[%s189 + $0x788] sm:$0xff]
        %v467 = vld [vmem:[%s189 + $0x790] sm:$0xff]
        %v468 = vld [vmem:[%s189 + $0x798] sm:$0xff]
        %v469 = vld [vmem:[%s189 + $0x7a0] sm:$0xff]
        %v470 = vld [vmem:[%s189 + $0x7a8] sm:$0xff]
        %v471 = vld [vmem:[%s189 + $0x7b0] sm:$0xff]
        %v472 = vld [vmem:[%s189 + $0x7b8] sm:$0xff]
        %v473 = vld [vmem:[%s189 + $0x7c0] sm:$0xff]
        %v474 = vld [vmem:[%s189 + $0x7c8] sm:$0xff]
        %v475 = vld [vmem:[%s189 + $0x7d0] sm:$0xff]
        %v476 = vld [vmem:[%s189 + $0x7d8] sm:$0xff]
        %v477 = vld [vmem:[%s189 + $0x7e0] sm:$0xff]
        %v478 = vld [vmem:[%s189 + $0x7e8] sm:$0xff]
        %v479 = vld [vmem:[%s189 + $0x7f0] sm:$0xff]
        %v480 = vld [vmem:[%s189 + $0x7f8] sm:$0xff]
        %v482 = vlaneseq
        %v483 = vshrl.u32 %v482, 7
        %v484 = vsub.s32 0, %v483
        %v485 = vrot.slane %v224, %v484
        %v486 = vlaneseq
        %v487 = vshrl.u32 %v486, 7
        %v488 = vsub.s32 1, %v487
        %v489 = vrot.slane %v224, %v488
        %v490 = vlaneseq
        %v491 = vshrl.u32 %v490, 7
        %v492 = vsub.s32 2, %v491
        %v493 = vrot.slane %v224, %v492
        %v494 = vlaneseq
        %v495 = vshrl.u32 %v494, 7
        %v496 = vsub.s32 3, %v495
        %v497 = vrot.slane %v224, %v496
        %502 = vmatprep.subr.mxu0 %v226
        %503 = vmatpush1.xpose.msra.mxu0 %v225
        %504 = vmatprep.subr.mxu0 %v230
        %505 = vmatpush1.xpose.msra.mxu0 %v229
        %506 = vmatprep.subr.mxu0 %v234
        %507 = vmatpush1.xpose.msra.mxu0 %v233
        %508 = vmatprep.subr.mxu0 %v238
        %509 = vmatpush1.xpose.msra.mxu0 %v237
        %510 = vmatprep.subr.mxu0 %v242
        %511 = vmatpush1.xpose.msra.mxu0 %v241
        %512 = vmatprep.subr.mxu0 %v246
        %513 = vmatpush1.xpose.msra.mxu0 %v245
        %514 = vmatprep.subr.mxu0 %v250
        %515 = vmatpush1.xpose.msra.mxu0 %v249
        %516 = vmatprep.subr.mxu0 %v254
        %517 = vmatpush1.xpose.msra.mxu0 %v253
        %518 = vmatprep.subr.mxu0 %v258
        %519 = vmatpush1.xpose.msra.mxu0 %v257
        %520 = vmatprep.subr.mxu0 %v262
        %521 = vmatpush1.xpose.msra.mxu0 %v261
        %522 = vmatprep.subr.mxu0 %v266
        %523 = vmatpush1.xpose.msra.mxu0 %v265
        %524 = vmatprep.subr.mxu0 %v270
        %525 = vmatpush1.xpose.msra.mxu0 %v269
        %526 = vmatprep.subr.mxu0 %v274
        %527 = vmatpush1.xpose.msra.mxu0 %v273
        %528 = vmatprep.subr.mxu0 %v278
        %529 = vmatpush1.xpose.msra.mxu0 %v277
        %530 = vmatprep.subr.mxu0 %v282
        %531 = vmatpush1.xpose.msra.mxu0 %v281
        %532 = vmatprep.subr.mxu0 %v286
        %533 = vmatpush1.xpose.msra.mxu0 %v285
        %534 = vmatprep.subr.mxu0 %v290
        %535 = vmatpush1.xpose.msra.mxu0 %v289
        %536 = vmatprep.subr.mxu0 %v294
        %537 = vmatpush1.xpose.msra.mxu0 %v293
        %538 = vmatprep.subr.mxu0 %v298
        %539 = vmatpush1.xpose.msra.mxu0 %v297
        %540 = vmatprep.subr.mxu0 %v302
        %541 = vmatpush1.xpose.msra.mxu0 %v301
        %542 = vmatprep.subr.mxu0 %v306
        %543 = vmatpush1.xpose.msra.mxu0 %v305
        %544 = vmatprep.subr.mxu0 %v310
        %545 = vmatpush1.xpose.msra.mxu0 %v309
        %546 = vmatprep.subr.mxu0 %v314
        %547 = vmatpush1.xpose.msra.mxu0 %v313
        %548 = vmatprep.subr.mxu0 %v318
        %549 = vmatpush1.xpose.msra.mxu0 %v317
        %550 = vmatprep.subr.mxu0 %v322
        %551 = vmatpush1.xpose.msra.mxu0 %v321
        %552 = vmatprep.subr.mxu0 %v326
        %553 = vmatpush1.xpose.msra.mxu0 %v325
        %554 = vmatprep.subr.mxu0 %v330
        %555 = vmatpush1.xpose.msra.mxu0 %v329
        %556 = vmatprep.subr.mxu0 %v334
        %557 = vmatpush1.xpose.msra.mxu0 %v333
        %558 = vmatprep.subr.mxu0 %v338
        %559 = vmatpush1.xpose.msra.mxu0 %v337
        %560 = vmatprep.subr.mxu0 %v342
        %561 = vmatpush1.xpose.msra.mxu0 %v341
        %562 = vmatprep.subr.mxu0 %v346
        %563 = vmatpush1.xpose.msra.mxu0 %v345
        %564 = vmatprep.subr.mxu0 %v350
        %565 = vmatpush1.xpose.msra.mxu0 %v349
        %566 = vmatprep.mubr.f32.mxu0 %v489
        %567 = vmatmul.mubr.f32.gmra.mrb[0].mxu0 %v485
        %v568 = vpop.f32.mrb[0].mxu0
        %v569 = vadd.f32 0.0, %v568
        %v570 = vpop.f32.mrb[0].mxu0
        %v571 = vadd.f32 0.0, %v570
        %572 = vdwg.mxu0
        %573 = vmatprep.subr.mxu0 %v228
        %574 = vmatpush1.xpose.msra.mxu0 %v227
        %575 = vmatprep.subr.mxu0 %v232
        %576 = vmatpush1.xpose.msra.mxu0 %v231
        %577 = vmatprep.subr.mxu0 %v236
        %578 = vmatpush1.xpose.msra.mxu0 %v235
        %579 = vmatprep.subr.mxu0 %v240
        %580 = vmatpush1.xpose.msra.mxu0 %v239
        %581 = vmatprep.subr.mxu0 %v244
        %582 = vmatpush1.xpose.msra.mxu0 %v243
        %583 = vmatprep.subr.mxu0 %v248
        %584 = vmatpush1.xpose.msra.mxu0 %v247
        %585 = vmatprep.subr.mxu0 %v252
        %586 = vmatpush1.xpose.msra.mxu0 %v251
        %587 = vmatprep.subr.mxu0 %v256
        %588 = vmatpush1.xpose.msra.mxu0 %v255
        %589 = vmatprep.subr.mxu0 %v260
        %590 = vmatpush1.xpose.msra.mxu0 %v259
        %591 = vmatprep.subr.mxu0 %v264
        %592 = vmatpush1.xpose.msra.mxu0 %v263
        %593 = vmatprep.subr.mxu0 %v268
        %594 = vmatpush1.xpose.msra.mxu0 %v267
        %595 = vmatprep.subr.mxu0 %v272
        %596 = vmatpush1.xpose.msra.mxu0 %v271
        %597 = vmatprep.subr.mxu0 %v276
        %598 = vmatpush1.xpose.msra.mxu0 %v275
        %599 = vmatprep.subr.mxu0 %v280
        %600 = vmatpush1.xpose.msra.mxu0 %v279
        %601 = vmatprep.subr.mxu0 %v284
        %602 = vmatpush1.xpose.msra.mxu0 %v283
        %603 = vmatprep.subr.mxu0 %v288
        %604 = vmatpush1.xpose.msra.mxu0 %v287
        %605 = vmatprep.subr.mxu0 %v292
        %606 = vmatpush1.xpose.msra.mxu0 %v291
        %607 = vmatprep.subr.mxu0 %v296
        %608 = vmatpush1.xpose.msra.mxu0 %v295
        %609 = vmatprep.subr.mxu0 %v300
        %610 = vmatpush1.xpose.msra.mxu0 %v299
        %611 = vmatprep.subr.mxu0 %v304
        %612 = vmatpush1.xpose.msra.mxu0 %v303
        %613 = vmatprep.subr.mxu0 %v308
        %614 = vmatpush1.xpose.msra.mxu0 %v307
        %615 = vmatprep.subr.mxu0 %v312
        %616 = vmatpush1.xpose.msra.mxu0 %v311
        %617 = vmatprep.subr.mxu0 %v316
        %618 = vmatpush1.xpose.msra.mxu0 %v315
        %619 = vmatprep.subr.mxu0 %v320
        %620 = vmatpush1.xpose.msra.mxu0 %v319
        %621 = vmatprep.subr.mxu0 %v324
        %622 = vmatpush1.xpose.msra.mxu0 %v323
        %623 = vmatprep.subr.mxu0 %v328
        %624 = vmatpush1.xpose.msra.mxu0 %v327
        %625 = vmatprep.subr.mxu0 %v332
        %626 = vmatpush1.xpose.msra.mxu0 %v331
        %627 = vmatprep.subr.mxu0 %v336
        %628 = vmatpush1.xpose.msra.mxu0 %v335
        %629 = vmatprep.subr.mxu0 %v340
        %630 = vmatpush1.xpose.msra.mxu0 %v339
        %631 = vmatprep.subr.mxu0 %v344
        %632 = vmatpush1.xpose.msra.mxu0 %v343
        %633 = vmatprep.subr.mxu0 %v348
        %634 = vmatpush1.xpose.msra.mxu0 %v347
        %635 = vmatprep.subr.mxu0 %v352
        %636 = vmatpush1.xpose.msra.mxu0 %v351
        %637 = vmatprep.mubr.f32.mxu0 %v497
        %638 = vmatmul.mubr.f32.gmra.mrb[0].mxu0 %v493
        %v639 = vpop.f32.mrb[0].mxu0
        %v640 = vadd.f32 %v569, %v639
        %v641 = vpop.f32.mrb[0].mxu0
        %v642 = vadd.f32 %v571, %v641
        %643 = vdwg.mxu0
        %644 = vmatprep.subr.mxu0 %v354
        %645 = vmatpush1.xpose.msra.mxu0 %v353
        %646 = vmatprep.subr.mxu0 %v358
        %647 = vmatpush1.xpose.msra.mxu0 %v357
        %648 = vmatprep.subr.mxu0 %v362
        %649 = vmatpush1.xpose.msra.mxu0 %v361
        %650 = vmatprep.subr.mxu0 %v366
        %651 = vmatpush1.xpose.msra.mxu0 %v365
        %652 = vmatprep.subr.mxu0 %v370
        %653 = vmatpush1.xpose.msra.mxu0 %v369
        %654 = vmatprep.subr.mxu0 %v374
        %655 = vmatpush1.xpose.msra.mxu0 %v373
        %656 = vmatprep.subr.mxu0 %v378
        %657 = vmatpush1.xpose.msra.mxu0 %v377
        %658 = vmatprep.subr.mxu0 %v382
        %659 = vmatpush1.xpose.msra.mxu0 %v381
        %660 = vmatprep.subr.mxu0 %v386
        %661 = vmatpush1.xpose.msra.mxu0 %v385
        %662 = vmatprep.subr.mxu0 %v390
        %663 = vmatpush1.xpose.msra.mxu0 %v389
        %664 = vmatprep.subr.mxu0 %v394
        %665 = vmatpush1.xpose.msra.mxu0 %v393
        %666 = vmatprep.subr.mxu0 %v398
        %667 = vmatpush1.xpose.msra.mxu0 %v397
        %668 = vmatprep.subr.mxu0 %v402
        %669 = vmatpush1.xpose.msra.mxu0 %v401
        %670 = vmatprep.subr.mxu0 %v406
        %671 = vmatpush1.xpose.msra.mxu0 %v405
        %672 = vmatprep.subr.mxu0 %v410
        %673 = vmatpush1.xpose.msra.mxu0 %v409
        %674 = vmatprep.subr.mxu0 %v414
        %675 = vmatpush1.xpose.msra.mxu0 %v413
        %676 = vmatprep.subr.mxu0 %v418
        %677 = vmatpush1.xpose.msra.mxu0 %v417
        %678 = vmatprep.subr.mxu0 %v422
        %679 = vmatpush1.xpose.msra.mxu0 %v421
        %680 = vmatprep.subr.mxu0 %v426
        %681 = vmatpush1.xpose.msra.mxu0 %v425
        %682 = vmatprep.subr.mxu0 %v430
        %683 = vmatpush1.xpose.msra.mxu0 %v429
        %684 = vmatprep.subr.mxu0 %v434
        %685 = vmatpush1.xpose.msra.mxu0 %v433
        %686 = vmatprep.subr.mxu0 %v438
        %687 = vmatpush1.xpose.msra.mxu0 %v437
        %688 = vmatprep.subr.mxu0 %v442
        %689 = vmatpush1.xpose.msra.mxu0 %v441
        %690 = vmatprep.subr.mxu0 %v446
        %691 = vmatpush1.xpose.msra.mxu0 %v445
        %692 = vmatprep.subr.mxu0 %v450
        %693 = vmatpush1.xpose.msra.mxu0 %v449
        %694 = vmatprep.subr.mxu0 %v454
        %695 = vmatpush1.xpose.msra.mxu0 %v453
        %696 = vmatprep.subr.mxu0 %v458
        %697 = vmatpush1.xpose.msra.mxu0 %v457
        %698 = vmatprep.subr.mxu0 %v462
        %699 = vmatpush1.xpose.msra.mxu0 %v461
        %700 = vmatprep.subr.mxu0 %v466
        %701 = vmatpush1.xpose.msra.mxu0 %v465
        %702 = vmatprep.subr.mxu0 %v470
        %703 = vmatpush1.xpose.msra.mxu0 %v469
        %704 = vmatprep.subr.mxu0 %v474
        %705 = vmatpush1.xpose.msra.mxu0 %v473
        %706 = vmatprep.subr.mxu0 %v478
        %707 = vmatpush1.xpose.msra.mxu0 %v477
        %708 = vmatprep.mubr.f32.mxu0 %v489
        %709 = vmatmul.mubr.f32.gmra.mrb[0].mxu0 %v485
        %v710 = vpop.f32.mrb[0].mxu0
        %v711 = vadd.f32 0.0, %v710
        %v712 = vpop.f32.mrb[0].mxu0
        %v713 = vadd.f32 0.0, %v712
        %714 = vdwg.mxu0
        %715 = vmatprep.subr.mxu0 %v356
        %716 = vmatpush1.xpose.msra.mxu0 %v355
        %717 = vmatprep.subr.mxu0 %v360
        %718 = vmatpush1.xpose.msra.mxu0 %v359
        %719 = vmatprep.subr.mxu0 %v364
        %720 = vmatpush1.xpose.msra.mxu0 %v363
        %721 = vmatprep.subr.mxu0 %v368
        %722 = vmatpush1.xpose.msra.mxu0 %v367
        %723 = vmatprep.subr.mxu0 %v372
        %724 = vmatpush1.xpose.msra.mxu0 %v371
        %725 = vmatprep.subr.mxu0 %v376
        %726 = vmatpush1.xpose.msra.mxu0 %v375
        %727 = vmatprep.subr.mxu0 %v380
        %728 = vmatpush1.xpose.msra.mxu0 %v379
        %729 = vmatprep.subr.mxu0 %v384
        %730 = vmatpush1.xpose.msra.mxu0 %v383
        %731 = vmatprep.subr.mxu0 %v388
        %732 = vmatpush1.xpose.msra.mxu0 %v387
        %733 = vmatprep.subr.mxu0 %v392
        %734 = vmatpush1.xpose.msra.mxu0 %v391
        %735 = vmatprep.subr.mxu0 %v396
        %736 = vmatpush1.xpose.msra.mxu0 %v395
        %737 = vmatprep.subr.mxu0 %v400
        %738 = vmatpush1.xpose.msra.mxu0 %v399
        %739 = vmatprep.subr.mxu0 %v404
        %740 = vmatpush1.xpose.msra.mxu0 %v403
        %741 = vmatprep.subr.mxu0 %v408
        %742 = vmatpush1.xpose.msra.mxu0 %v407
        %743 = vmatprep.subr.mxu0 %v412
        %744 = vmatpush1.xpose.msra.mxu0 %v411
        %745 = vmatprep.subr.mxu0 %v416
        %746 = vmatpush1.xpose.msra.mxu0 %v415
        %747 = vmatprep.subr.mxu0 %v420
        %748 = vmatpush1.xpose.msra.mxu0 %v419
        %749 = vmatprep.subr.mxu0 %v424
        %750 = vmatpush1.xpose.msra.mxu0 %v423
        %751 = vmatprep.subr.mxu0 %v428
        %752 = vmatpush1.xpose.msra.mxu0 %v427
        %753 = vmatprep.subr.mxu0 %v432
        %754 = vmatpush1.xpose.msra.mxu0 %v431
        %755 = vmatprep.subr.mxu0 %v436
        %756 = vmatpush1.xpose.msra.mxu0 %v435
        %757 = vmatprep.subr.mxu0 %v440
        %758 = vmatpush1.xpose.msra.mxu0 %v439
        %759 = vmatprep.subr.mxu0 %v444
        %760 = vmatpush1.xpose.msra.mxu0 %v443
        %761 = vmatprep.subr.mxu0 %v448
        %762 = vmatpush1.xpose.msra.mxu0 %v447
        %763 = vmatprep.subr.mxu0 %v452
        %764 = vmatpush1.xpose.msra.mxu0 %v451
        %765 = vmatprep.subr.mxu0 %v456
        %766 = vmatpush1.xpose.msra.mxu0 %v455
        %767 = vmatprep.subr.mxu0 %v460
        %768 = vmatpush1.xpose.msra.mxu0 %v459
        %769 = vmatprep.subr.mxu0 %v464
        %770 = vmatpush1.xpose.msra.mxu0 %v463
        %771 = vmatprep.subr.mxu0 %v468
        %772 = vmatpush1.xpose.msra.mxu0 %v467
        %773 = vmatprep.subr.mxu0 %v472
        %774 = vmatpush1.xpose.msra.mxu0 %v471
        %775 = vmatprep.subr.mxu0 %v476
        %776 = vmatpush1.xpose.msra.mxu0 %v475
        %777 = vmatprep.subr.mxu0 %v480
        %778 = vmatpush1.xpose.msra.mxu0 %v479
        %779 = vmatprep.mubr.f32.mxu0 %v497
        %780 = vmatmul.mubr.f32.gmra.mrb[0].mxu0 %v493
        %v781 = vpop.f32.mrb[0].mxu0
        %v782 = vadd.f32 %v711, %v781
        %v783 = vpop.f32.mrb[0].mxu0
        %v784 = vadd.f32 %v713, %v783
        %785 = vdwg.mxu0
        %v790 = vcombine.low %v640, %v642
        %v791 = vcombine.low %v782, %v784
        %v793 = vunpack.c.l.s4 1966171168
        %v794 = vunpack.c.0.s8 %v793
        %v795 = vlaneseq
        %v796 = vshrl.u32 %v795, 7
        %v797 = vsub.s32 %v794, %v796
        %v798 = vrot.slane %v790, %v797
        %v800 = vunpack.c.l.s4 1966171168
        %v801 = vunpack.c.0.s8 %v800
        %v802 = vlaneseq
        %v803 = vshrl.u32 %v802, 7
        %v804 = vsub.s32 %v801, %v803
        %v805 = vrot.slane %v791, %v804
        %v806 = vcombine.low %v798, %v805
        %v808 = vunpack.c.l.s4 1966171168
        %v809 = vunpack.c.0.s8 %v808
        %v810 = vlaneseq
        %v811 = vshrl.u32 %v810, 7
        %v812 = vsub.s32 %v809, %v811
        %v813 = vrot.slane %v806, %v812
        %v815 = vadd.f32 %v223, %v813
        %v816 = vlaneseq
        %vm817 = vcmp.ge.s32.totalorder %v816, 0
        %vm818 = vcmp.lt.s32.totalorder %v816, 512
        %vm819 = vmand %vm817, %vm818
        %820 = vst.msk [vmem:[#allocation2] sm:$0xf] %vm819, %v815
        %p821 = scmp.eq.s32.totalorder %s25, 1
        // Predicated region
        $region41: #{tpu_custom_call.1} parent=27 // pred_check
          %p822 = pneg %p821
        $region42: #{tpu_custom_call.1} parent=27 // pred_check_branch
          %824 = sbr.rel (%p822) target = $region44
        $region43: #{tpu_custom_call.1} parent=27 // pred_region
          %v825 = vld [vmem:[#allocation2] sm:$0xf]
          %826 = vst.msk [vmem:[#allocation8] sm:$0xf] %vm819, %v825
        $region44: #{tpu_custom_call.1} parent=27 // pred_fallthru
          _
        // Predicated region
        $region45: #{tpu_custom_call.1} parent=27 // pred_check
          %p827 = pneg %p104
        $region46: #{tpu_custom_call.1} parent=27 // pred_check_branch
          %829 = sbr.rel (%p827) target = $region48
        $region47: #{tpu_custom_call.1} parent=27 // pred_region
          %s830 = smul.u32 4, %s24
          %s832 = ssub.s32 64, 64
          %833 = vsyncadd [#allocation5], %s832
          %s834 = smul.addr %s830, 16
          %s835 = scalar_lea.hbm %s2, %s834
          %s837 = sshll.u32 [#allocation8], 4
          %s838 = int_to_ptr.vmem [resolvable:$true] %s837
          %840 = dma.vmem_to_hbm [thread:$0]  %s838, 64, %s835, [#allocation5]
        $region48: #{tpu_custom_call.1} parent=27 // pred_fallthru
          _
        // Predicated region
        $region49: #{tpu_custom_call.1} parent=27 // pred_check
          %p841 = pneg %p104
        $region50: #{tpu_custom_call.1} parent=27 // pred_check_branch
          %843 = sbr.rel (%p841) target = $region52
        $region51: #{tpu_custom_call.1} parent=27 // pred_region
          %844 = dma.done [#allocation5], 64
        $region52: #{tpu_custom_call.1} parent=27 // pred_fallthru
          _
      $region28: #{tpu_custom_call.1} parent=5 // pred_fallthru
        _
      %p845 = scmp.le.s32.totalorder 2, %s15
      // Predicated region
      $region53: #{tpu_custom_call.1} parent=5 // pred_check
        %p846 = pneg %p845
      $region54: #{tpu_custom_call.1} parent=5 // pred_check_branch
        %848 = sbr.rel (%p846) target = $region56
      $region55: #{tpu_custom_call.1} parent=5 // pred_region
        %s849 = ssub.s32 %s15, 2
      $region56: #{tpu_custom_call.1} parent=5 // pred_fallthru
        _
    $region6: #{tpu_custom_call.1} parent=1 // loop_footer
      %s19 = sadd.s32 1, %s15
    $region7: #{tpu_custom_call.1} parent=1 // loop_footer_branch
      %14 = sbr.rel target = $region3
    $region8: #{tpu_custom_call.1} parent=1 // loop_exit
      _
    %850 = vsyncpa [#allocation4], 1
    %s851 = scalar_lea.sflag [#allocation4], 1
    %852 = vsyncpa %s851, 1
    %853 = vsyncpa [#allocation7], 1
    %s854 = scalar_lea.sflag [#allocation7], 1
    %855 = vsyncpa %s854, 1
    %856 = vsyncpa [#allocation5], 1
    %s857 = scalar_lea.sflag [#allocation5], 1
    %858 = vsyncpa %s857, 1

</llo_original>
